<compile_context>
chip_gen: v5e
topology: v5e:2x2
jax: 0.10.0
libtpu: 0.0.40
codegen_flags: <defaults>
</compile_context>

<pallas_src>
import jax
import jax.numpy as jnp
from jax.experimental import pallas as pl
from jax.experimental.pallas import tpu as pltpu


LANES = 128
SUBLANES = 8
ROW_TILE_MAX = 1024  # 1024 x 128 f32 = 512 KiB per block


def _round_up(x, m):
    return ((x + m - 1) // m) * m


def _choose_row_tile(rows):
    # Large fused buffers: 1024-row blocks => >= 2 grid steps, so a "parallel"
    # grid axis can be sharded across both v7x TensorCores.
    # Small buffers: one full-extent block (satisfies the (8,128) rule).
    if rows >= 2 * ROW_TILE_MAX:
        return ROW_TILE_MAX
    return rows


def _lerp_kernel(f_ref, base_ref, delta_ref, o_ref):
    # f_ref: (1,) f32 scalar in SMEM; base/delta/o: (row_tile, 128) VMEM tiles.
    # out = base + f * delta   (== base*(1-f) + other*f, delta = other - base)
    f = f_ref[0]
    o_ref[...] = base_ref[...] + f * delta_ref[...]


def _fused_lerp(base2d, delta2d, factor, row_tile):
    """base2d, delta2d: (rows, 128) f32 with rows % row_tile == 0."""
    rows = base2d.shape[0]
    grid = (rows // row_tile,)
    f_arr = jnp.asarray(factor, dtype=jnp.float32).reshape(1)
    return pl.pallas_call(
        _lerp_kernel,
        out_shape=jax.ShapeDtypeStruct((rows, LANES), jnp.float32),
        grid_spec=pltpu.PrefetchScalarGridSpec(
            num_scalar_prefetch=0,
            grid=grid,
            in_specs=[
                pl.BlockSpec(memory_space=pltpu.SMEM),            # (1,) factor
                pl.BlockSpec((row_tile, LANES), lambda i: (i, 0)),  # base
                pl.BlockSpec((row_tile, LANES), lambda i: (i, 0)),  # delta
            ],
            out_specs=pl.BlockSpec((row_tile, LANES), lambda i: (i, 0)),
        ),
        compiler_params=pltpu.CompilerParams(
            dimension_semantics=("parallel",),
        ),
    )(f_arr, base2d, delta2d)


def _pack_params(tensors):
    """Flatten + concat tensors into one (rows, 128) f32 slab.

    Returns (buf2d, metas, row_tile) with metas[i] = (offset, numel, shape)."""
    metas, flats, off = [], [], 0
    for t in tensors:
        flat = jnp.ravel(t).astype(jnp.float32)
        n = flat.shape[0]
        metas.append((off, n, tuple(t.shape)))
        flats.append(flat)
        off += n
    flat_all = jnp.concatenate(flats) if len(flats) > 1 else flats[0]
    total = off
    rows = _round_up(_round_up(total, LANES) // LANES, SUBLANES)
    row_tile = _choose_row_tile(rows)
    rows = _round_up(rows, row_tile)
    flat_all = jnp.pad(flat_all, (0, rows * LANES - total))
    return flat_all.reshape(rows, LANES), metas, row_tile


class PolygonalChainPallas:
    """Polygonal chain with one bend; forward(t) is one fused Pallas kernel."""

    def __init__(self, start, stop, lambd=0.5):
        for p1, p2 in zip(start, stop):
            assert p1.shape == p2.shape
        self.eps = 0.01
        self.start = list(start)
        self.stop = list(stop)
        self.lambd = float(lambd)
        self.bend_parameters = []
        self.initialize()

    def initialize(self):
        # TODO(synk): bend_parameters are plain arrays (no nn.Parameter/autograd).
        self.bend_parameters = [
            (1.0 - self.lambd) * p1 + self.lambd * p2
            for p1, p2 in zip(self.start, self.stop)
        ]

        # One-time packing: fused (rows, 128) slabs + precomputed deltas.
        start2d, metas, row_tile = _pack_params(self.start)
        bend2d, _, _ = _pack_params(self.bend_parameters)
        stop2d, _, _ = _pack_params(self.stop)

        self._metas = tuple(metas)
        self._row_tile = row_tile
        self._base_lo2d = start2d                 # segment start -> bend
        self._delta_lo2d = bend2d - start2d
        self._base_hi2d = bend2d                  # segment bend -> stop
        self._delta_hi2d = stop2d - bend2d

        metas_ = self._metas
        rt = row_tile

        @jax.jit
        def _fwd(base2d, delta2d, factor):
            out2d = _fused_lerp(base2d, delta2d, factor, rt)
            flat = out2d.reshape(-1)
            # correct_shape: slice each tensor back out and reshape to stop shape.
            return tuple(flat[off:off + n].reshape(shape)
                         for off, n, shape in metas_)

        self._fwd = _fwd

    def forward(self, t):
        if t <= self.lambd:
            f = t / self.lambd
            outs = self._fwd(self._base_lo2d, self._delta_lo2d, jnp.float32(f))
        else:
            f = (t - self.lambd) / (1.0 - self.lambd)
            outs = self._fwd(self._base_hi2d, self._delta_hi2d, jnp.float32(f))
        return list(outs)

    __call__ = forward


def _reference_forward(chain, t):
    out = []
    if t <= chain.lambd:
        f = t / chain.lambd
        for p1, theta in zip(chain.start, chain.bend_parameters):
            out.append(p1 * (1.0 - f) + theta * f)
    else:
        f = (t - chain.lambd) / (1.0 - chain.lambd)
        for theta, p2 in zip(chain.bend_parameters, chain.stop):
            out.append(theta * (1.0 - f) + p2 * f)
    return out


if __name__ == "__main__":
    key = jax.random.PRNGKey(0)
    # Small deterministic "model parameters": conv weight (OIHW), its bias, a
    # linear weight, plus one moderately sized matrix so the fused kernel also
    # exercises the multi-block (grid > 1) tiled path.
    shapes = [(4, 4, 3, 3), (4,), (8, 32), (256, 1024)]
    keys = jax.random.split(key, 2 * len(shapes))
    start = [jax.random.normal(keys[2 * i], s, dtype=jnp.float32)
             for i, s in enumerate(shapes)]
    stop = [jax.random.normal(keys[2 * i + 1], s, dtype=jnp.float32)
            for i, s in enumerate(shapes)]

    chain = PolygonalChainPallas(start, stop, lambd=0.5)

    ok = True
    for t in (0.3, 0.75):
        outs = chain(t)
        outs = [jax.block_until_ready(o) for o in outs]
        refs = _reference_forward(chain, t)
        for o, r in zip(outs, refs):
            if o.shape != r.shape or not bool(
                    jnp.allclose(o, r, rtol=1e-5, atol=1e-5)):
                ok = False

    print("KERNEL_OK" if ok else "KERNEL_MISMATCH")
</pallas_src>

<mosaic_0001>
module attributes {stable_mosaic.version = 11 : i64} {
  func.func @_lerp_kernel(%arg0: i32, %arg1: memref<1xf32, #tpu.memory_space<smem>>, %arg2: memref<1024x128xf32, #tpu.memory_space<vmem>>, %arg3: memref<1024x128xf32, #tpu.memory_space<vmem>>, %arg4: memref<1024x128xf32, #tpu.memory_space<vmem>>) attributes {dimension_semantics = [#tpu.dimension_semantics<parallel>], iteration_bounds = array<i64: 3>, scalar_prefetch = 0 : i64, scratch_operands = 0 : i64, tpu.core_type = #tpu.core_type<tc>, window_params = [{transform_indices = @transform_0, window_bounds = array<i64: 1>}, {transform_indices = @transform_1, window_bounds = array<i64: 1024, 128>}, {transform_indices = @transform_2, window_bounds = array<i64: 1024, 128>}, {transform_indices = @transform_3, window_bounds = array<i64: 1024, 128>}]} {
    %c0 = arith.constant 0 : index
    %0 = memref.load %arg1[%c0] : memref<1xf32, #tpu.memory_space<smem>>
    %c0_0 = arith.constant 0 : index
    %c0_1 = arith.constant 0 : index
    %1 = vector.load %arg2[%c0_0, %c0_1] : memref<1024x128xf32, #tpu.memory_space<vmem>>, vector<1024x128xf32>
    %c0_2 = arith.constant 0 : index
    %c0_3 = arith.constant 0 : index
    %2 = vector.load %arg3[%c0_2, %c0_3] : memref<1024x128xf32, #tpu.memory_space<vmem>>, vector<1024x128xf32>
    %3 = vector.broadcast %0 : f32 to vector<1024x128xf32>
    %4 = arith.mulf %3, %2 : vector<1024x128xf32>
    %5 = arith.addf %1, %4 : vector<1024x128xf32>
    %c0_4 = arith.constant 0 : index
    %c0_5 = arith.constant 0 : index
    %6 = vector.load %arg4[%c0_4, %c0_5] : memref<1024x128xf32, #tpu.memory_space<vmem>>, vector<1024x128xf32>
    tpu.vector_store %arg4[%c0_4, %c0_5], %5 {strides = array<i32>} : memref<1024x128xf32, #tpu.memory_space<vmem>>, vector<1024x128xf32>,
    return
  }
  func.func @transform_0(%arg0: i32) -> i32 {
    %c0_i32 = arith.constant 0 : i32
    %c0_i32_0 = arith.constant 0 : i32
    return %c0_i32 : i32
  }
  func.func @transform_1(%arg0: i32) -> (i32, i32) {
    %c0_i32 = arith.constant 0 : i32
    %c0_i32_0 = arith.constant 0 : i32
    return %arg0, %c0_i32 : i32, i32
  }
  func.func @transform_2(%arg0: i32) -> (i32, i32) {
    %c0_i32 = arith.constant 0 : i32
    %c0_i32_0 = arith.constant 0 : i32
    return %arg0, %c0_i32 : i32, i32
  }
  func.func @transform_3(%arg0: i32) -> (i32, i32) {
    %c0_i32 = arith.constant 0 : i32
    %c0_i32_0 = arith.constant 0 : i32
    return %arg0, %c0_i32 : i32, i32
  }
}

</mosaic_0001>

<llo_original>
// kernel: _fwd.1
$region0: #{_fwd.1}
  #allocation0 [shape = 'u32[]', space=smem, size = 0x4, offset = 0x4, fixed_abs, tag = 'smem constant byte address 0x4 - core index']
  #allocation1 [shape = 'u32[72,128]{1,0:T(1,128)}', space=vmem, size = 0x9000, scoped, tag = 'internal scratch']
  #allocation2 [shape = 'f32[1]{0:T(128)S(6)}', space=smem, size = 0x200, scoped, tag = 'scoped memory for _fwd.1']
  %s0 = inlined_call_operand.<no memory space> [shape: f32[1], index: 0, kind: input, shape index: {}]
  %s1 = inlined_call_operand.hbm [shape: f32[3072,128], index: 1, kind: input, shape index: {}]
  %s2 = inlined_call_operand.hbm [shape: f32[3072,128], index: 2, kind: input, shape index: {}]
  %s3 = inlined_call_operand.vmem [shape: f32[3072,128], index: 3, kind: output, shape index: {}]
  %s4 = sld [smem:[#allocation0]]
  $region53: #{_fwd.1} parent=0
    _
  %s6 = ssub.s32 1, %s4
  %s7 = scalar_select 0, %s6, %s4
  %8 = sst [smem:[#allocation2]] %s0
  $region1: #{_fwd.1} parent=0
    #allocation3 [shape = 'u8[1048576]{0}', space=vmem, size = 0x100000, scoped, tag = 'input window, operand 1']
    #allocation4 [shape = 's32[2]{0}', space=sflag, size = 0x8, scoped, tag = 'scoped memory for _fwd.1']
    #allocation5 [shape = 'u8[1048576]{0}', space=vmem, size = 0x100000, scoped, tag = 'input window, operand 2']
    #allocation6 [shape = 's32[2]{0}', space=sflag, size = 0x8, scoped, tag = 'scoped memory for _fwd.1']
    %9 = vsyncpa [#allocation4], 0
    %s10 = scalar_lea.sflag [#allocation4], 1
    %11 = vsyncpa %s10, 0
    %12 = vsyncpa [#allocation6], 0
    %s13 = scalar_lea.sflag [#allocation6], 1
    %14 = vsyncpa %s13, 0
    loop: start=0, step=1, limit=5
    $region2: #{_fwd.1} parent=1 // loop_pre_header
      _
    $region3: #{_fwd.1} parent=1 // loop_header
      %s16 = sphi 0, %s20
      %p17 = scmp.ge.s32.totalorder %s16, 5
      %s24 = sphi 0, %s24
      %s26 = sphi 0, %s24
      %s27 = sphi 0, %s26
      %s41 = sphi 0, %s27
      %s47 = sphi 0, %s49
      %s50 = sphi 0, %s47
      %s51 = sphi 0, %s50
      %s67 = sphi 0, %s51
      %s73 = sphi 0, %s75
      %s76 = sphi 0, %s73
      %s77 = sphi 0, %s76
      %s93 = sphi 0, %s77
      %s99 = sphi 0, %s101
      %s102 = sphi 0, %s99
      %s103 = sphi 0, %s102
      %s119 = sphi 0, %s103
    $region4: #{_fwd.1} parent=1 // loop_header_branch
      %19 = sbr.rel (%p17) target = $region8
    $region5: #{_fwd.1} parent=1 // loop_body
      %s21 = ssub.s32 %s16, 1
      %s22 = ssub.s32 %s16, 2
      %s23 = sadd.s32 %s16, 1
      %s25 = sadd.s32 %s24, 1
      %p28 = scmp.eq.s32.totalorder %s16, 2
      %p29 = scmp.ne.s32.totalorder %s24, %s26
      %p30 = scmp.eq.s32.totalorder %s16, 0
      %p31 = por %p29, %p30
      %p32 = scmp.ne.s32.totalorder %s24, %s26
      %p33 = scmp.eq.s32.totalorder %s21, 2
      %p34 = por %p32, %p33
      %p35 = scmp.ne.s32.totalorder %s26, %s27
      %p36 = scmp.eq.s32.totalorder %s21, 0
      %p37 = por %p35, %p36
      %p38 = scmp.ne.s32.totalorder %s26, %s27
      %p39 = scmp.eq.s32.totalorder %s22, 2
      %p40 = por %p38, %p39
      %p42 = scmp.ne.s32.totalorder %s27, %s41
      %p43 = scmp.eq.s32.totalorder %s22, 0
      %p44 = por %p42, %p43
      %s45 = ssub.s32 %s16, %s23
      %p46 = scmp.eq.s32.totalorder %s45, 0
      %s48 = sadd.s32 %s47, 1
      %s49 = scalar_select %p46, %s47, %s48
      %p52 = pneg %p46
      %p53 = scmp.eq.s32.totalorder %s16, 2
      %p54 = por %p52, %p53
      %p55 = scmp.ne.s32.totalorder %s47, %s50
      %p56 = scmp.eq.s32.totalorder %s16, 0
      %p57 = por %p55, %p56
      %p58 = scmp.ne.s32.totalorder %s47, %s50
      %p59 = scmp.eq.s32.totalorder %s21, 2
      %p60 = por %p58, %p59
      %p61 = scmp.ne.s32.totalorder %s50, %s51
      %p62 = scmp.eq.s32.totalorder %s21, 0
      %p63 = por %p61, %p62
      %p64 = scmp.ne.s32.totalorder %s50, %s51
      %p65 = scmp.eq.s32.totalorder %s22, 2
      %p66 = por %p64, %p65
      %p68 = scmp.ne.s32.totalorder %s51, %s67
      %p69 = scmp.eq.s32.totalorder %s22, 0
      %p70 = por %p68, %p69
      %s71 = ssub.s32 %s16, %s23
      %p72 = scmp.eq.s32.totalorder %s71, 0
      %s74 = sadd.s32 %s73, 1
      %s75 = scalar_select %p72, %s73, %s74
      %p78 = pneg %p72
      %p79 = scmp.eq.s32.totalorder %s16, 2
      %p80 = por %p78, %p79
      %p81 = scmp.ne.s32.totalorder %s73, %s76
      %p82 = scmp.eq.s32.totalorder %s16, 0
      %p83 = por %p81, %p82
      %p84 = scmp.ne.s32.totalorder %s73, %s76
      %p85 = scmp.eq.s32.totalorder %s21, 2
      %p86 = por %p84, %p85
      %p87 = scmp.ne.s32.totalorder %s76, %s77
      %p88 = scmp.eq.s32.totalorder %s21, 0
      %p89 = por %p87, %p88
      %p90 = scmp.ne.s32.totalorder %s76, %s77
      %p91 = scmp.eq.s32.totalorder %s22, 2
      %p92 = por %p90, %p91
      %p94 = scmp.ne.s32.totalorder %s77, %s93
      %p95 = scmp.eq.s32.totalorder %s22, 0
      %p96 = por %p94, %p95
      %s97 = ssub.s32 %s16, %s23
      %p98 = scmp.eq.s32.totalorder %s97, 0
      %s100 = sadd.s32 %s99, 1
      %s101 = scalar_select %p98, %s99, %s100
      %p104 = pneg %p98
      %p105 = scmp.eq.s32.totalorder %s16, 2
      %p106 = por %p104, %p105
      %p107 = scmp.ne.s32.totalorder %s99, %s102
      %p108 = scmp.eq.s32.totalorder %s16, 0
      %p109 = por %p107, %p108
      %p110 = scmp.ne.s32.totalorder %s99, %s102
      %p111 = scmp.eq.s32.totalorder %s21, 2
      %p112 = por %p110, %p111
      %p113 = scmp.ne.s32.totalorder %s102, %s103
      %p114 = scmp.eq.s32.totalorder %s21, 0
      %p115 = por %p113, %p114
      %p116 = scmp.ne.s32.totalorder %s102, %s103
      %p117 = scmp.eq.s32.totalorder %s22, 2
      %p118 = por %p116, %p117
      %p120 = scmp.ne.s32.totalorder %s103, %s119
      %p121 = scmp.eq.s32.totalorder %s22, 0
      %p122 = por %p120, %p121
      %p123 = scmp.le.s32.totalorder 1, %s16
      %p124 = scmp.lt.s32.totalorder %s16, 4
      %p125 = pnand %p123, %p124
      %p126 = pneg %p125
      // Predicated region
      $region9: #{_fwd.1} parent=5 // pred_check
        _
      $region10: #{_fwd.1} parent=5 // pred_check_branch
        %128 = sbr.rel (%p125) target = $region12
      $region11: #{_fwd.1} parent=5 // pred_region
        %s129 = ssub.s32 %s16, 1
        // Predicated region
        $region13: #{_fwd.1} parent=11 // pred_check
          %p130 = pneg %p37
        $region14: #{_fwd.1} parent=11 // pred_check_branch
          %132 = sbr.rel (%p130) target = $region16
        $region15: #{_fwd.1} parent=11 // pred_region
          _
        $region16: #{_fwd.1} parent=11 // pred_fallthru
          _
      $region12: #{_fwd.1} parent=5 // pred_fallthru
        _
      %p133 = scmp.lt.s32.totalorder %s16, 3
      // Predicated region
      $region17: #{_fwd.1} parent=5 // pred_check
        %p134 = pneg %p133
      $region18: #{_fwd.1} parent=5 // pred_check_branch
        %136 = sbr.rel (%p134) target = $region20
      $region19: #{_fwd.1} parent=5 // pred_region
        // Predicated region
        $region21: #{_fwd.1} parent=19 // pred_check
          %p137 = pneg %p57
        $region22: #{_fwd.1} parent=19 // pred_check_branch
          %139 = sbr.rel (%p137) target = $region24
        $region23: #{_fwd.1} parent=19 // pred_region
          %s140 = sand.u32 %s47, 1
          %s141 = scalar_lea.sflag [#allocation4], %s140
          %s142 = sand.u32 %s47, 1
          %s143 = smul.addr %s142, 1024
          %s144 = scalar_lea.vmem [#allocation3], %s143
          %s145 = smul.u32 128, %s16
          %147 = vsyncadd %s141, 0
          %s148 = smul.addr %s145, 8
          %s149 = scalar_lea.hbm %s1, %s148
          %s150 = sshll.u32 %s149, 4
          %s151 = int_to_ptr.hbm [resolvable:$true] %s150
          %s152 = sshll.u32 %s144, 4
          %s153 = int_to_ptr.vmem [resolvable:$true] %s152
          %158 = dma.hbm_to_vmem [thread:$0]  %s151, 16384, %s153, %s141, 128, 128, 8
        $region24: #{_fwd.1} parent=19 // pred_fallthru
          _
        // Predicated region
        $region25: #{_fwd.1} parent=19 // pred_check
          %p159 = pneg %p83
        $region26: #{_fwd.1} parent=19 // pred_check_branch
          %161 = sbr.rel (%p159) target = $region28
        $region27: #{_fwd.1} parent=19 // pred_region
          %s162 = sand.u32 %s73, 1
          %s163 = scalar_lea.sflag [#allocation6], %s162
          %s164 = sand.u32 %s73, 1
          %s165 = smul.addr %s164, 1024
          %s166 = scalar_lea.vmem [#allocation5], %s165
          %s167 = smul.u32 128, %s16
          %169 = vsyncadd %s163, 0
          %s170 = smul.addr %s167, 8
          %s171 = scalar_lea.hbm %s2, %s170
          %s172 = sshll.u32 %s171, 4
          %s173 = int_to_ptr.hbm [resolvable:$true] %s172
          %s174 = sshll.u32 %s166, 4
          %s175 = int_to_ptr.vmem [resolvable:$true] %s174
          %180 = dma.hbm_to_vmem [thread:$0]  %s173, 16384, %s175, %s163, 128, 128, 8
        $region28: #{_fwd.1} parent=19 // pred_fallthru
          _
      $region20: #{_fwd.1} parent=5 // pred_fallthru
        _
      %p181 = scmp.le.s32.totalorder 1, %s16
      %p182 = scmp.lt.s32.totalorder %s16, 4
      %p183 = pnand %p181, %p182
      %p184 = pneg %p183
      // Predicated region
      $region29: #{_fwd.1} parent=5 // pred_check
        _
      $region30: #{_fwd.1} parent=5 // pred_check_branch
        %186 = sbr.rel (%p183) target = $region32
      $region31: #{_fwd.1} parent=5 // pred_region
        %s187 = ssub.s32 %s16, 1
        %s188 = sand.u32 %s50, 1
        %s189 = scalar_lea.sflag [#allocation4], %s188
        %s190 = sand.u32 %s50, 1
        %s191 = smul.addr %s190, 1024
        %s192 = scalar_lea.vmem [#allocation3], %s191
        // Predicated region
        $region33: #{_fwd.1} parent=31 // pred_check
          %p193 = pneg %p63
        $region34: #{_fwd.1} parent=31 // pred_check_branch
          %195 = sbr.rel (%p193) target = $region36
        $region35: #{_fwd.1} parent=31 // pred_region
          %197 = dma.done %s189, 16384
        $region36: #{_fwd.1} parent=31 // pred_fallthru
          _
        %s198 = sand.u32 %s76, 1
        %s199 = scalar_lea.sflag [#allocation6], %s198
        %s200 = sand.u32 %s76, 1
        %s201 = smul.addr %s200, 1024
        %s202 = scalar_lea.vmem [#allocation5], %s201
        // Predicated region
        $region37: #{_fwd.1} parent=31 // pred_check
          %p203 = pneg %p89
        $region38: #{_fwd.1} parent=31 // pred_check_branch
          %205 = sbr.rel (%p203) target = $region40
        $region39: #{_fwd.1} parent=31 // pred_region
          %207 = dma.done %s199, 16384
        $region40: #{_fwd.1} parent=31 // pred_fallthru
          _
        %p208 = pneg %p37
        %p209 = pneg %p34
        %s210 = sand.u32 %s50, 1
        %s211 = scalar_lea.sflag [#allocation4], %s210
        %s212 = sand.u32 %s50, 1
        %s213 = smul.addr %s212, 1024
        %s214 = scalar_lea.vmem [#allocation3], %s213
        %p215 = pneg %p63
        %p216 = pneg %p60
        %s217 = sand.u32 %s76, 1
        %s218 = scalar_lea.sflag [#allocation6], %s217
        %s219 = sand.u32 %s76, 1
        %s220 = smul.addr %s219, 1024
        %s221 = scalar_lea.vmem [#allocation5], %s220
        %p222 = pneg %p89
        %p223 = pneg %p86
        %p224 = pneg %p115
        %p225 = pneg %p112
        %s226 = smul.u32 128, %s21
        %p227 = scmp.lt.s32.totalorder %s226, 383
        %s228 = scalar_select %p227, %s226, 383
        %s229 = smul.addr %s228, 8
        %s230 = scalar_lea.vmem %s3, %s229
        %s231 = smul.u32 128, %s21
        %s232 = smul.u32 128, %s21
        %s233 = smul.u32 128, %s21
        %p234 = scmp.lt.s32.totalorder %s233, 383
        %s235 = scalar_select %p234, %s233, 383
        %s236 = smul.addr %s235, 8
        %s237 = scalar_lea.vmem %s3, %s236
        %s238 = smul.u32 128, %s21
        %s239 = sld [smem:[#allocation2]]
        %v240 = vld [vmem:[%s192] sm:$0xff]
        %v241 = vld [vmem:[%s192 + $0x8] sm:$0xff]
        %v242 = vld [vmem:[%s192 + $0x10] sm:$0xff]
        %v243 = vld [vmem:[%s192 + $0x18] sm:$0xff]
        %v244 = vld [vmem:[%s192 + $0x20] sm:$0xff]
        %v245 = vld [vmem:[%s192 + $0x28] sm:$0xff]
        %v246 = vld [vmem:[%s192 + $0x30] sm:$0xff]
        %v247 = vld [vmem:[%s192 + $0x38] sm:$0xff]
        %v248 = vld [vmem:[%s192 + $0x40] sm:$0xff]
        %v249 = vld [vmem:[%s192 + $0x48] sm:$0xff]
        %v250 = vld [vmem:[%s192 + $0x50] sm:$0xff]
        %v251 = vld [vmem:[%s192 + $0x58] sm:$0xff]
        %v252 = vld [vmem:[%s192 + $0x60] sm:$0xff]
        %v253 = vld [vmem:[%s192 + $0x68] sm:$0xff]
        %v254 = vld [vmem:[%s192 + $0x70] sm:$0xff]
        %v255 = vld [vmem:[%s192 + $0x78] sm:$0xff]
        %v256 = vld [vmem:[%s192 + $0x80] sm:$0xff]
        %v257 = vld [vmem:[%s192 + $0x88] sm:$0xff]
        %v258 = vld [vmem:[%s192 + $0x90] sm:$0xff]
        %v259 = vld [vmem:[%s192 + $0x98] sm:$0xff]
        %v260 = vld [vmem:[%s192 + $0xa0] sm:$0xff]
        %v261 = vld [vmem:[%s192 + $0xa8] sm:$0xff]
        %v262 = vld [vmem:[%s192 + $0xb0] sm:$0xff]
        %v263 = vld [vmem:[%s192 + $0xb8] sm:$0xff]
        %v264 = vld [vmem:[%s192 + $0xc0] sm:$0xff]
        %v265 = vld [vmem:[%s192 + $0xc8] sm:$0xff]
        %v266 = vld [vmem:[%s192 + $0xd0] sm:$0xff]
        %v267 = vld [vmem:[%s192 + $0xd8] sm:$0xff]
        %v268 = vld [vmem:[%s192 + $0xe0] sm:$0xff]
        %v269 = vld [vmem:[%s192 + $0xe8] sm:$0xff]
        %v270 = vld [vmem:[%s192 + $0xf0] sm:$0xff]
        %v271 = vld [vmem:[%s192 + $0xf8] sm:$0xff]
        %v272 = vld [vmem:[%s192 + $0x100] sm:$0xff]
        %v273 = vld [vmem:[%s192 + $0x108] sm:$0xff]
        %v274 = vld [vmem:[%s192 + $0x110] sm:$0xff]
        %v275 = vld [vmem:[%s192 + $0x118] sm:$0xff]
        %v276 = vld [vmem:[%s192 + $0x120] sm:$0xff]
        %v277 = vld [vmem:[%s192 + $0x128] sm:$0xff]
        %v278 = vld [vmem:[%s192 + $0x130] sm:$0xff]
        %v279 = vld [vmem:[%s192 + $0x138] sm:$0xff]
        %v280 = vld [vmem:[%s192 + $0x140] sm:$0xff]
        %v281 = vld [vmem:[%s192 + $0x148] sm:$0xff]
        %v282 = vld [vmem:[%s192 + $0x150] sm:$0xff]
        %v283 = vld [vmem:[%s192 + $0x158] sm:$0xff]
        %v284 = vld [vmem:[%s192 + $0x160] sm:$0xff]
        %v285 = vld [vmem:[%s192 + $0x168] sm:$0xff]
        %v286 = vld [vmem:[%s192 + $0x170] sm:$0xff]
        %v287 = vld [vmem:[%s192 + $0x178] sm:$0xff]
        %v288 = vld [vmem:[%s192 + $0x180] sm:$0xff]
        %v289 = vld [vmem:[%s192 + $0x188] sm:$0xff]
        %v290 = vld [vmem:[%s192 + $0x190] sm:$0xff]
        %v291 = vld [vmem:[%s192 + $0x198] sm:$0xff]
        %v292 = vld [vmem:[%s192 + $0x1a0] sm:$0xff]
        %v293 = vld [vmem:[%s192 + $0x1a8] sm:$0xff]
        %v294 = vld [vmem:[%s192 + $0x1b0] sm:$0xff]
        %v295 = vld [vmem:[%s192 + $0x1b8] sm:$0xff]
        %v296 = vld [vmem:[%s192 + $0x1c0] sm:$0xff]
        %v297 = vld [vmem:[%s192 + $0x1c8] sm:$0xff]
        %v298 = vld [vmem:[%s192 + $0x1d0] sm:$0xff]
        %v299 = vld [vmem:[%s192 + $0x1d8] sm:$0xff]
        %v300 = vld [vmem:[%s192 + $0x1e0] sm:$0xff]
        %v301 = vld [vmem:[%s192 + $0x1e8] sm:$0xff]
        %v302 = vld [vmem:[%s192 + $0x1f0] sm:$0xff]
        %v303 = vld [vmem:[%s192 + $0x1f8] sm:$0xff]
        %v304 = vld [vmem:[%s192 + $0x200] sm:$0xff]
        %v305 = vld [vmem:[%s192 + $0x208] sm:$0xff]
        %v306 = vld [vmem:[%s192 + $0x210] sm:$0xff]
        %v307 = vld [vmem:[%s192 + $0x218] sm:$0xff]
        %v308 = vld [vmem:[%s192 + $0x220] sm:$0xff]
        %v309 = vld [vmem:[%s192 + $0x228] sm:$0xff]
        %v310 = vld [vmem:[%s192 + $0x230] sm:$0xff]
        %v311 = vld [vmem:[%s192 + $0x238] sm:$0xff]
        %v312 = vld [vmem:[%s192 + $0x240] sm:$0xff]
        %v313 = vld [vmem:[%s192 + $0x248] sm:$0xff]
        %v314 = vld [vmem:[%s192 + $0x250] sm:$0xff]
        %v315 = vld [vmem:[%s192 + $0x258] sm:$0xff]
        %v316 = vld [vmem:[%s192 + $0x260] sm:$0xff]
        %v317 = vld [vmem:[%s192 + $0x268] sm:$0xff]
        %v318 = vld [vmem:[%s192 + $0x270] sm:$0xff]
        %v319 = vld [vmem:[%s192 + $0x278] sm:$0xff]
        %v320 = vld [vmem:[%s192 + $0x280] sm:$0xff]
        %v321 = vld [vmem:[%s192 + $0x288] sm:$0xff]
        %v322 = vld [vmem:[%s192 + $0x290] sm:$0xff]
        %v323 = vld [vmem:[%s192 + $0x298] sm:$0xff]
        %v324 = vld [vmem:[%s192 + $0x2a0] sm:$0xff]
        %v325 = vld [vmem:[%s192 + $0x2a8] sm:$0xff]
        %v326 = vld [vmem:[%s192 + $0x2b0] sm:$0xff]
        %v327 = vld [vmem:[%s192 + $0x2b8] sm:$0xff]
        %v328 = vld [vmem:[%s192 + $0x2c0] sm:$0xff]
        %v329 = vld [vmem:[%s192 + $0x2c8] sm:$0xff]
        %v330 = vld [vmem:[%s192 + $0x2d0] sm:$0xff]
        %v331 = vld [vmem:[%s192 + $0x2d8] sm:$0xff]
        %v332 = vld [vmem:[%s192 + $0x2e0] sm:$0xff]
        %v333 = vld [vmem:[%s192 + $0x2e8] sm:$0xff]
        %v334 = vld [vmem:[%s192 + $0x2f0] sm:$0xff]
        %v335 = vld [vmem:[%s192 + $0x2f8] sm:$0xff]
        %v336 = vld [vmem:[%s192 + $0x300] sm:$0xff]
        %v337 = vld [vmem:[%s192 + $0x308] sm:$0xff]
        %v338 = vld [vmem:[%s192 + $0x310] sm:$0xff]
        %v339 = vld [vmem:[%s192 + $0x318] sm:$0xff]
        %v340 = vld [vmem:[%s192 + $0x320] sm:$0xff]
        %v341 = vld [vmem:[%s192 + $0x328] sm:$0xff]
        %v342 = vld [vmem:[%s192 + $0x330] sm:$0xff]
        %v343 = vld [vmem:[%s192 + $0x338] sm:$0xff]
        %v344 = vld [vmem:[%s192 + $0x340] sm:$0xff]
        %v345 = vld [vmem:[%s192 + $0x348] sm:$0xff]
        %v346 = vld [vmem:[%s192 + $0x350] sm:$0xff]
        %v347 = vld [vmem:[%s192 + $0x358] sm:$0xff]
        %v348 = vld [vmem:[%s192 + $0x360] sm:$0xff]
        %v349 = vld [vmem:[%s192 + $0x368] sm:$0xff]
        %v350 = vld [vmem:[%s192 + $0x370] sm:$0xff]
        %v351 = vld [vmem:[%s192 + $0x378] sm:$0xff]
        %v352 = vld [vmem:[%s192 + $0x380] sm:$0xff]
        %v353 = vld [vmem:[%s192 + $0x388] sm:$0xff]
        %v354 = vld [vmem:[%s192 + $0x390] sm:$0xff]
        %v355 = vld [vmem:[%s192 + $0x398] sm:$0xff]
        %v356 = vld [vmem:[%s192 + $0x3a0] sm:$0xff]
        %v357 = vld [vmem:[%s192 + $0x3a8] sm:$0xff]
        %v358 = vld [vmem:[%s192 + $0x3b0] sm:$0xff]
        %v359 = vld [vmem:[%s192 + $0x3b8] sm:$0xff]
        %v360 = vld [vmem:[%s192 + $0x3c0] sm:$0xff]
        %v361 = vld [vmem:[%s192 + $0x3c8] sm:$0xff]
        %v362 = vld [vmem:[%s192 + $0x3d0] sm:$0xff]
        %v363 = vld [vmem:[%s192 + $0x3d8] sm:$0xff]
        %v364 = vld [vmem:[%s192 + $0x3e0] sm:$0xff]
        %v365 = vld [vmem:[%s192 + $0x3e8] sm:$0xff]
        %v366 = vld [vmem:[%s192 + $0x3f0] sm:$0xff]
        %v367 = vld [vmem:[%s192 + $0x3f8] sm:$0xff]
        %v368 = vld [vmem:[%s202] sm:$0xff]
        %v369 = vld [vmem:[%s202 + $0x8] sm:$0xff]
        %v370 = vld [vmem:[%s202 + $0x10] sm:$0xff]
        %v371 = vld [vmem:[%s202 + $0x18] sm:$0xff]
        %v372 = vld [vmem:[%s202 + $0x20] sm:$0xff]
        %v373 = vld [vmem:[%s202 + $0x28] sm:$0xff]
        %v374 = vld [vmem:[%s202 + $0x30] sm:$0xff]
        %v375 = vld [vmem:[%s202 + $0x38] sm:$0xff]
        %v376 = vld [vmem:[%s202 + $0x40] sm:$0xff]
        %v377 = vld [vmem:[%s202 + $0x48] sm:$0xff]
        %v378 = vld [vmem:[%s202 + $0x50] sm:$0xff]
        %v379 = vld [vmem:[%s202 + $0x58] sm:$0xff]
        %v380 = vld [vmem:[%s202 + $0x60] sm:$0xff]
        %v381 = vld [vmem:[%s202 + $0x68] sm:$0xff]
        %v382 = vld [vmem:[%s202 + $0x70] sm:$0xff]
        %v383 = vld [vmem:[%s202 + $0x78] sm:$0xff]
        %v384 = vld [vmem:[%s202 + $0x80] sm:$0xff]
        %v385 = vld [vmem:[%s202 + $0x88] sm:$0xff]
        %v386 = vld [vmem:[%s202 + $0x90] sm:$0xff]
        %v387 = vld [vmem:[%s202 + $0x98] sm:$0xff]
        %v388 = vld [vmem:[%s202 + $0xa0] sm:$0xff]
        %v389 = vld [vmem:[%s202 + $0xa8] sm:$0xff]
        %v390 = vld [vmem:[%s202 + $0xb0] sm:$0xff]
        %v391 = vld [vmem:[%s202 + $0xb8] sm:$0xff]
        %v392 = vld [vmem:[%s202 + $0xc0] sm:$0xff]
        %v393 = vld [vmem:[%s202 + $0xc8] sm:$0xff]
        %v394 = vld [vmem:[%s202 + $0xd0] sm:$0xff]
        %v395 = vld [vmem:[%s202 + $0xd8] sm:$0xff]
        %v396 = vld [vmem:[%s202 + $0xe0] sm:$0xff]
        %v397 = vld [vmem:[%s202 + $0xe8] sm:$0xff]
        %v398 = vld [vmem:[%s202 + $0xf0] sm:$0xff]
        %v399 = vld [vmem:[%s202 + $0xf8] sm:$0xff]
        %v400 = vld [vmem:[%s202 + $0x100] sm:$0xff]
        %v401 = vld [vmem:[%s202 + $0x108] sm:$0xff]
        %v402 = vld [vmem:[%s202 + $0x110] sm:$0xff]
        %v403 = vld [vmem:[%s202 + $0x118] sm:$0xff]
        %v404 = vld [vmem:[%s202 + $0x120] sm:$0xff]
        %v405 = vld [vmem:[%s202 + $0x128] sm:$0xff]
        %v406 = vld [vmem:[%s202 + $0x130] sm:$0xff]
        %v407 = vld [vmem:[%s202 + $0x138] sm:$0xff]
        %v408 = vld [vmem:[%s202 + $0x140] sm:$0xff]
        %v409 = vld [vmem:[%s202 + $0x148] sm:$0xff]
        %v410 = vld [vmem:[%s202 + $0x150] sm:$0xff]
        %v411 = vld [vmem:[%s202 + $0x158] sm:$0xff]
        %v412 = vld [vmem:[%s202 + $0x160] sm:$0xff]
        %v413 = vld [vmem:[%s202 + $0x168] sm:$0xff]
        %v414 = vld [vmem:[%s202 + $0x170] sm:$0xff]
        %v415 = vld [vmem:[%s202 + $0x178] sm:$0xff]
        %v416 = vld [vmem:[%s202 + $0x180] sm:$0xff]
        %v417 = vld [vmem:[%s202 + $0x188] sm:$0xff]
        %v418 = vld [vmem:[%s202 + $0x190] sm:$0xff]
        %v419 = vld [vmem:[%s202 + $0x198] sm:$0xff]
        %v420 = vld [vmem:[%s202 + $0x1a0] sm:$0xff]
        %v421 = vld [vmem:[%s202 + $0x1a8] sm:$0xff]
        %v422 = vld [vmem:[%s202 + $0x1b0] sm:$0xff]
        %v423 = vld [vmem:[%s202 + $0x1b8] sm:$0xff]
        %v424 = vld [vmem:[%s202 + $0x1c0] sm:$0xff]
        %v425 = vld [vmem:[%s202 + $0x1c8] sm:$0xff]
        %v426 = vld [vmem:[%s202 + $0x1d0] sm:$0xff]
        %v427 = vld [vmem:[%s202 + $0x1d8] sm:$0xff]
        %v428 = vld [vmem:[%s202 + $0x1e0] sm:$0xff]
        %v429 = vld [vmem:[%s202 + $0x1e8] sm:$0xff]
        %v430 = vld [vmem:[%s202 + $0x1f0] sm:$0xff]
        %v431 = vld [vmem:[%s202 + $0x1f8] sm:$0xff]
        %v432 = vld [vmem:[%s202 + $0x200] sm:$0xff]
        %v433 = vld [vmem:[%s202 + $0x208] sm:$0xff]
        %v434 = vld [vmem:[%s202 + $0x210] sm:$0xff]
        %v435 = vld [vmem:[%s202 + $0x218] sm:$0xff]
        %v436 = vld [vmem:[%s202 + $0x220] sm:$0xff]
        %v437 = vld [vmem:[%s202 + $0x228] sm:$0xff]
        %v438 = vld [vmem:[%s202 + $0x230] sm:$0xff]
        %v439 = vld [vmem:[%s202 + $0x238] sm:$0xff]
        %v440 = vld [vmem:[%s202 + $0x240] sm:$0xff]
        %v441 = vld [vmem:[%s202 + $0x248] sm:$0xff]
        %v442 = vld [vmem:[%s202 + $0x250] sm:$0xff]
        %v443 = vld [vmem:[%s202 + $0x258] sm:$0xff]
        %v444 = vld [vmem:[%s202 + $0x260] sm:$0xff]
        %v445 = vld [vmem:[%s202 + $0x268] sm:$0xff]
        %v446 = vld [vmem:[%s202 + $0x270] sm:$0xff]
        %v447 = vld [vmem:[%s202 + $0x278] sm:$0xff]
        %v448 = vld [vmem:[%s202 + $0x280] sm:$0xff]
        %v449 = vld [vmem:[%s202 + $0x288] sm:$0xff]
        %v450 = vld [vmem:[%s202 + $0x290] sm:$0xff]
        %v451 = vld [vmem:[%s202 + $0x298] sm:$0xff]
        %v452 = vld [vmem:[%s202 + $0x2a0] sm:$0xff]
        %v453 = vld [vmem:[%s202 + $0x2a8] sm:$0xff]
        %v454 = vld [vmem:[%s202 + $0x2b0] sm:$0xff]
        %v455 = vld [vmem:[%s202 + $0x2b8] sm:$0xff]
        %v456 = vld [vmem:[%s202 + $0x2c0] sm:$0xff]
        %v457 = vld [vmem:[%s202 + $0x2c8] sm:$0xff]
        %v458 = vld [vmem:[%s202 + $0x2d0] sm:$0xff]
        %v459 = vld [vmem:[%s202 + $0x2d8] sm:$0xff]
        %v460 = vld [vmem:[%s202 + $0x2e0] sm:$0xff]
        %v461 = vld [vmem:[%s202 + $0x2e8] sm:$0xff]
        %v462 = vld [vmem:[%s202 + $0x2f0] sm:$0xff]
        %v463 = vld [vmem:[%s202 + $0x2f8] sm:$0xff]
        %v464 = vld [vmem:[%s202 + $0x300] sm:$0xff]
        %v465 = vld [vmem:[%s202 + $0x308] sm:$0xff]
        %v466 = vld [vmem:[%s202 + $0x310] sm:$0xff]
        %v467 = vld [vmem:[%s202 + $0x318] sm:$0xff]
        %v468 = vld [vmem:[%s202 + $0x320] sm:$0xff]
        %v469 = vld [vmem:[%s202 + $0x328] sm:$0xff]
        %v470 = vld [vmem:[%s202 + $0x330] sm:$0xff]
        %v471 = vld [vmem:[%s202 + $0x338] sm:$0xff]
        %v472 = vld [vmem:[%s202 + $0x340] sm:$0xff]
        %v473 = vld [vmem:[%s202 + $0x348] sm:$0xff]
        %v474 = vld [vmem:[%s202 + $0x350] sm:$0xff]
        %v475 = vld [vmem:[%s202 + $0x358] sm:$0xff]
        %v476 = vld [vmem:[%s202 + $0x360] sm:$0xff]
        %v477 = vld [vmem:[%s202 + $0x368] sm:$0xff]
        %v478 = vld [vmem:[%s202 + $0x370] sm:$0xff]
        %v479 = vld [vmem:[%s202 + $0x378] sm:$0xff]
        %v480 = vld [vmem:[%s202 + $0x380] sm:$0xff]
        %v481 = vld [vmem:[%s202 + $0x388] sm:$0xff]
        %v482 = vld [vmem:[%s202 + $0x390] sm:$0xff]
        %v483 = vld [vmem:[%s202 + $0x398] sm:$0xff]
        %v484 = vld [vmem:[%s202 + $0x3a0] sm:$0xff]
        %v485 = vld [vmem:[%s202 + $0x3a8] sm:$0xff]
        %v486 = vld [vmem:[%s202 + $0x3b0] sm:$0xff]
        %v487 = vld [vmem:[%s202 + $0x3b8] sm:$0xff]
        %v488 = vld [vmem:[%s202 + $0x3c0] sm:$0xff]
        %v489 = vld [vmem:[%s202 + $0x3c8] sm:$0xff]
        %v490 = vld [vmem:[%s202 + $0x3d0] sm:$0xff]
        %v491 = vld [vmem:[%s202 + $0x3d8] sm:$0xff]
        %v492 = vld [vmem:[%s202 + $0x3e0] sm:$0xff]
        %v493 = vld [vmem:[%s202 + $0x3e8] sm:$0xff]
        %v494 = vld [vmem:[%s202 + $0x3f0] sm:$0xff]
        %v495 = vld [vmem:[%s202 + $0x3f8] sm:$0xff]
        %v496 = vstv %s239
        %v497 = vmul.f32 %v496, %v368
        %v498 = vmul.f32 %v496, %v369
        %v499 = vmul.f32 %v496, %v370
        %v500 = vmul.f32 %v496, %v371
        %v501 = vmul.f32 %v496, %v372
        %v502 = vmul.f32 %v496, %v373
        %v503 = vmul.f32 %v496, %v374
        %v504 = vmul.f32 %v496, %v375
        %v505 = vmul.f32 %v496, %v376
        %v506 = vmul.f32 %v496, %v377
        %v507 = vmul.f32 %v496, %v378
        %v508 = vmul.f32 %v496, %v379
        %v509 = vmul.f32 %v496, %v380
        %v510 = vmul.f32 %v496, %v381
        %v511 = vmul.f32 %v496, %v382
        %v512 = vmul.f32 %v496, %v383
        %v513 = vmul.f32 %v496, %v384
        %v514 = vmul.f32 %v496, %v385
        %v515 = vmul.f32 %v496, %v386
        %v516 = vmul.f32 %v496, %v387
        %v517 = vmul.f32 %v496, %v388
        %v518 = vmul.f32 %v496, %v389
        %v519 = vmul.f32 %v496, %v390
        %v520 = vmul.f32 %v496, %v391
        %v521 = vmul.f32 %v496, %v392
        %v522 = vmul.f32 %v496, %v393
        %v523 = vmul.f32 %v496, %v394
        %v524 = vmul.f32 %v496, %v395
        %v525 = vmul.f32 %v496, %v396
        %v526 = vmul.f32 %v496, %v397
        %v527 = vmul.f32 %v496, %v398
        %v528 = vmul.f32 %v496, %v399
        %v529 = vmul.f32 %v496, %v400
        %v530 = vmul.f32 %v496, %v401
        %v531 = vmul.f32 %v496, %v402
        %v532 = vmul.f32 %v496, %v403
        %v533 = vmul.f32 %v496, %v404
        %v534 = vmul.f32 %v496, %v405
        %v535 = vmul.f32 %v496, %v406
        %v536 = vmul.f32 %v496, %v407
        %v537 = vmul.f32 %v496, %v408
        %v538 = vmul.f32 %v496, %v409
        %v539 = vmul.f32 %v496, %v410
        %v540 = vmul.f32 %v496, %v411
        %v541 = vmul.f32 %v496, %v412
        %v542 = vmul.f32 %v496, %v413
        %v543 = vmul.f32 %v496, %v414
        %v544 = vmul.f32 %v496, %v415
        %v545 = vmul.f32 %v496, %v416
        %v546 = vmul.f32 %v496, %v417
        %v547 = vmul.f32 %v496, %v418
        %v548 = vmul.f32 %v496, %v419
        %v549 = vmul.f32 %v496, %v420
        %v550 = vmul.f32 %v496, %v421
        %v551 = vmul.f32 %v496, %v422
        %v552 = vmul.f32 %v496, %v423
        %v553 = vmul.f32 %v496, %v424
        %v554 = vmul.f32 %v496, %v425
        %v555 = vmul.f32 %v496, %v426
        %v556 = vmul.f32 %v496, %v427
        %v557 = vmul.f32 %v496, %v428
        %v558 = vmul.f32 %v496, %v429
        %v559 = vmul.f32 %v496, %v430
        %v560 = vmul.f32 %v496, %v431
        %v561 = vmul.f32 %v496, %v432
        %v562 = vmul.f32 %v496, %v433
        %v563 = vmul.f32 %v496, %v434
        %v564 = vmul.f32 %v496, %v435
        %v565 = vmul.f32 %v496, %v436
        %v566 = vmul.f32 %v496, %v437
        %v567 = vmul.f32 %v496, %v438
        %v568 = vmul.f32 %v496, %v439
        %v569 = vmul.f32 %v496, %v440
        %v570 = vmul.f32 %v496, %v441
        %v571 = vmul.f32 %v496, %v442
        %v572 = vmul.f32 %v496, %v443
        %v573 = vmul.f32 %v496, %v444
        %v574 = vmul.f32 %v496, %v445
        %v575 = vmul.f32 %v496, %v446
        %v576 = vmul.f32 %v496, %v447
        %v577 = vmul.f32 %v496, %v448
        %v578 = vmul.f32 %v496, %v449
        %v579 = vmul.f32 %v496, %v450
        %v580 = vmul.f32 %v496, %v451
        %v581 = vmul.f32 %v496, %v452
        %v582 = vmul.f32 %v496, %v453
        %v583 = vmul.f32 %v496, %v454
        %v584 = vmul.f32 %v496, %v455
        %v585 = vmul.f32 %v496, %v456
        %v586 = vmul.f32 %v496, %v457
        %v587 = vmul.f32 %v496, %v458
        %v588 = vmul.f32 %v496, %v459
        %v589 = vmul.f32 %v496, %v460
        %v590 = vmul.f32 %v496, %v461
        %v591 = vmul.f32 %v496, %v462
        %v592 = vmul.f32 %v496, %v463
        %v593 = vmul.f32 %v496, %v464
        %v594 = vmul.f32 %v496, %v465
        %v595 = vmul.f32 %v496, %v466
        %v596 = vmul.f32 %v496, %v467
        %v597 = vmul.f32 %v496, %v468
        %v598 = vmul.f32 %v496, %v469
        %v599 = vmul.f32 %v496, %v470
        %v600 = vmul.f32 %v496, %v471
        %v601 = vmul.f32 %v496, %v472
        %v602 = vmul.f32 %v496, %v473
        %v603 = vmul.f32 %v496, %v474
        %v604 = vmul.f32 %v496, %v475
        %v605 = vmul.f32 %v496, %v476
        %v606 = vmul.f32 %v496, %v477
        %v607 = vmul.f32 %v496, %v478
        %v608 = vmul.f32 %v496, %v479
        %v609 = vmul.f32 %v496, %v480
        %v610 = vmul.f32 %v496, %v481
        %v611 = vmul.f32 %v496, %v482
        %v612 = vmul.f32 %v496, %v483
        %v613 = vmul.f32 %v496, %v484
        %v614 = vmul.f32 %v496, %v485
        %v615 = vmul.f32 %v496, %v486
        %v616 = vmul.f32 %v496, %v487
        %v617 = vmul.f32 %v496, %v488
        %v618 = vmul.f32 %v496, %v489
        %v619 = vmul.f32 %v496, %v490
        %v620 = vmul.f32 %v496, %v491
        %v621 = vmul.f32 %v496, %v492
        %v622 = vmul.f32 %v496, %v493
        %v623 = vmul.f32 %v496, %v494
        %v624 = vmul.f32 %v496, %v495
        %v625 = vadd.f32 %v240, %v497
        %v626 = vadd.f32 %v241, %v498
        %v627 = vadd.f32 %v242, %v499
        %v628 = vadd.f32 %v243, %v500
        %v629 = vadd.f32 %v244, %v501
        %v630 = vadd.f32 %v245, %v502
        %v631 = vadd.f32 %v246, %v503
        %v632 = vadd.f32 %v247, %v504
        %v633 = vadd.f32 %v248, %v505
        %v634 = vadd.f32 %v249, %v506
        %v635 = vadd.f32 %v250, %v507
        %v636 = vadd.f32 %v251, %v508
        %v637 = vadd.f32 %v252, %v509
        %v638 = vadd.f32 %v253, %v510
        %v639 = vadd.f32 %v254, %v511
        %v640 = vadd.f32 %v255, %v512
        %v641 = vadd.f32 %v256, %v513
        %v642 = vadd.f32 %v257, %v514
        %v643 = vadd.f32 %v258, %v515
        %v644 = vadd.f32 %v259, %v516
        %v645 = vadd.f32 %v260, %v517
        %v646 = vadd.f32 %v261, %v518
        %v647 = vadd.f32 %v262, %v519
        %v648 = vadd.f32 %v263, %v520
        %v649 = vadd.f32 %v264, %v521
        %v650 = vadd.f32 %v265, %v522
        %v651 = vadd.f32 %v266, %v523
        %v652 = vadd.f32 %v267, %v524
        %v653 = vadd.f32 %v268, %v525
        %v654 = vadd.f32 %v269, %v526
        %v655 = vadd.f32 %v270, %v527
        %v656 = vadd.f32 %v271, %v528
        %v657 = vadd.f32 %v272, %v529
        %v658 = vadd.f32 %v273, %v530
        %v659 = vadd.f32 %v274, %v531
        %v660 = vadd.f32 %v275, %v532
        %v661 = vadd.f32 %v276, %v533
        %v662 = vadd.f32 %v277, %v534
        %v663 = vadd.f32 %v278, %v535
        %v664 = vadd.f32 %v279, %v536
        %v665 = vadd.f32 %v280, %v537
        %v666 = vadd.f32 %v281, %v538
        %v667 = vadd.f32 %v282, %v539
        %v668 = vadd.f32 %v283, %v540
        %v669 = vadd.f32 %v284, %v541
        %v670 = vadd.f32 %v285, %v542
        %v671 = vadd.f32 %v286, %v543
        %v672 = vadd.f32 %v287, %v544
        %v673 = vadd.f32 %v288, %v545
        %v674 = vadd.f32 %v289, %v546
        %v675 = vadd.f32 %v290, %v547
        %v676 = vadd.f32 %v291, %v548
        %v677 = vadd.f32 %v292, %v549
        %v678 = vadd.f32 %v293, %v550
        %v679 = vadd.f32 %v294, %v551
        %v680 = vadd.f32 %v295, %v552
        %v681 = vadd.f32 %v296, %v553
        %v682 = vadd.f32 %v297, %v554
        %v683 = vadd.f32 %v298, %v555
        %v684 = vadd.f32 %v299, %v556
        %v685 = vadd.f32 %v300, %v557
        %v686 = vadd.f32 %v301, %v558
        %v687 = vadd.f32 %v302, %v559
        %v688 = vadd.f32 %v303, %v560
        %v689 = vadd.f32 %v304, %v561
        %v690 = vadd.f32 %v305, %v562
        %v691 = vadd.f32 %v306, %v563
        %v692 = vadd.f32 %v307, %v564
        %v693 = vadd.f32 %v308, %v565
        %v694 = vadd.f32 %v309, %v566
        %v695 = vadd.f32 %v310, %v567
        %v696 = vadd.f32 %v311, %v568
        %v697 = vadd.f32 %v312, %v569
        %v698 = vadd.f32 %v313, %v570
        %v699 = vadd.f32 %v314, %v571
        %v700 = vadd.f32 %v315, %v572
        %v701 = vadd.f32 %v316, %v573
        %v702 = vadd.f32 %v317, %v574
        %v703 = vadd.f32 %v318, %v575
        %v704 = vadd.f32 %v319, %v576
        %v705 = vadd.f32 %v320, %v577
        %v706 = vadd.f32 %v321, %v578
        %v707 = vadd.f32 %v322, %v579
        %v708 = vadd.f32 %v323, %v580
        %v709 = vadd.f32 %v324, %v581
        %v710 = vadd.f32 %v325, %v582
        %v711 = vadd.f32 %v326, %v583
        %v712 = vadd.f32 %v327, %v584
        %v713 = vadd.f32 %v328, %v585
        %v714 = vadd.f32 %v329, %v586
        %v715 = vadd.f32 %v330, %v587
        %v716 = vadd.f32 %v331, %v588
        %v717 = vadd.f32 %v332, %v589
        %v718 = vadd.f32 %v333, %v590
        %v719 = vadd.f32 %v334, %v591
        %v720 = vadd.f32 %v335, %v592
        %v721 = vadd.f32 %v336, %v593
        %v722 = vadd.f32 %v337, %v594
        %v723 = vadd.f32 %v338, %v595
        %v724 = vadd.f32 %v339, %v596
        %v725 = vadd.f32 %v340, %v597
        %v726 = vadd.f32 %v341, %v598
        %v727 = vadd.f32 %v342, %v599
        %v728 = vadd.f32 %v343, %v600
        %v729 = vadd.f32 %v344, %v601
        %v730 = vadd.f32 %v345, %v602
        %v731 = vadd.f32 %v346, %v603
        %v732 = vadd.f32 %v347, %v604
        %v733 = vadd.f32 %v348, %v605
        %v734 = vadd.f32 %v349, %v606
        %v735 = vadd.f32 %v350, %v607
        %v736 = vadd.f32 %v351, %v608
        %v737 = vadd.f32 %v352, %v609
        %v738 = vadd.f32 %v353, %v610
        %v739 = vadd.f32 %v354, %v611
        %v740 = vadd.f32 %v355, %v612
        %v741 = vadd.f32 %v356, %v613
        %v742 = vadd.f32 %v357, %v614
        %v743 = vadd.f32 %v358, %v615
        %v744 = vadd.f32 %v359, %v616
        %v745 = vadd.f32 %v360, %v617
        %v746 = vadd.f32 %v361, %v618
        %v747 = vadd.f32 %v362, %v619
        %v748 = vadd.f32 %v363, %v620
        %v749 = vadd.f32 %v364, %v621
        %v750 = vadd.f32 %v365, %v622
        %v751 = vadd.f32 %v366, %v623
        %v752 = vadd.f32 %v367, %v624
        %753 = vst [vmem:[%s237] sm:$0xff] %v625
        %754 = vst [vmem:[%s237 + $0x8] sm:$0xff] %v626
        %755 = vst [vmem:[%s237 + $0x10] sm:$0xff] %v627
        %756 = vst [vmem:[%s237 + $0x18] sm:$0xff] %v628
        %757 = vst [vmem:[%s237 + $0x20] sm:$0xff] %v629
        %758 = vst [vmem:[%s237 + $0x28] sm:$0xff] %v630
        %759 = vst [vmem:[%s237 + $0x30] sm:$0xff] %v631
        %760 = vst [vmem:[%s237 + $0x38] sm:$0xff] %v632
        %761 = vst [vmem:[%s237 + $0x40] sm:$0xff] %v633
        %762 = vst [vmem:[%s237 + $0x48] sm:$0xff] %v634
        %763 = vst [vmem:[%s237 + $0x50] sm:$0xff] %v635
        %764 = vst [vmem:[%s237 + $0x58] sm:$0xff] %v636
        %765 = vst [vmem:[%s237 + $0x60] sm:$0xff] %v637
        %766 = vst [vmem:[%s237 + $0x68] sm:$0xff] %v638
        %767 = vst [vmem:[%s237 + $0x70] sm:$0xff] %v639
        %768 = vst [vmem:[%s237 + $0x78] sm:$0xff] %v640
        %769 = vst [vmem:[%s237 + $0x80] sm:$0xff] %v641
        %770 = vst [vmem:[%s237 + $0x88] sm:$0xff] %v642
        %771 = vst [vmem:[%s237 + $0x90] sm:$0xff] %v643
        %772 = vst [vmem:[%s237 + $0x98] sm:$0xff] %v644
        %773 = vst [vmem:[%s237 + $0xa0] sm:$0xff] %v645
        %774 = vst [vmem:[%s237 + $0xa8] sm:$0xff] %v646
        %775 = vst [vmem:[%s237 + $0xb0] sm:$0xff] %v647
        %776 = vst [vmem:[%s237 + $0xb8] sm:$0xff] %v648
        %777 = vst [vmem:[%s237 + $0xc0] sm:$0xff] %v649
        %778 = vst [vmem:[%s237 + $0xc8] sm:$0xff] %v650
        %779 = vst [vmem:[%s237 + $0xd0] sm:$0xff] %v651
        %780 = vst [vmem:[%s237 + $0xd8] sm:$0xff] %v652
        %781 = vst [vmem:[%s237 + $0xe0] sm:$0xff] %v653
        %782 = vst [vmem:[%s237 + $0xe8] sm:$0xff] %v654
        %783 = vst [vmem:[%s237 + $0xf0] sm:$0xff] %v655
        %784 = vst [vmem:[%s237 + $0xf8] sm:$0xff] %v656
        %785 = vst [vmem:[%s237 + $0x100] sm:$0xff] %v657
        %786 = vst [vmem:[%s237 + $0x108] sm:$0xff] %v658
        %787 = vst [vmem:[%s237 + $0x110] sm:$0xff] %v659
        %788 = vst [vmem:[%s237 + $0x118] sm:$0xff] %v660
        %789 = vst [vmem:[%s237 + $0x120] sm:$0xff] %v661
        %790 = vst [vmem:[%s237 + $0x128] sm:$0xff] %v662
        %791 = vst [vmem:[%s237 + $0x130] sm:$0xff] %v663
        %792 = vst [vmem:[%s237 + $0x138] sm:$0xff] %v664
        %793 = vst [vmem:[%s237 + $0x140] sm:$0xff] %v665
        %794 = vst [vmem:[%s237 + $0x148] sm:$0xff] %v666
        %795 = vst [vmem:[%s237 + $0x150] sm:$0xff] %v667
        %796 = vst [vmem:[%s237 + $0x158] sm:$0xff] %v668
        %797 = vst [vmem:[%s237 + $0x160] sm:$0xff] %v669
        %798 = vst [vmem:[%s237 + $0x168] sm:$0xff] %v670
        %799 = vst [vmem:[%s237 + $0x170] sm:$0xff] %v671
        %800 = vst [vmem:[%s237 + $0x178] sm:$0xff] %v672
        %801 = vst [vmem:[%s237 + $0x180] sm:$0xff] %v673
        %802 = vst [vmem:[%s237 + $0x188] sm:$0xff] %v674
        %803 = vst [vmem:[%s237 + $0x190] sm:$0xff] %v675
        %804 = vst [vmem:[%s237 + $0x198] sm:$0xff] %v676
        %805 = vst [vmem:[%s237 + $0x1a0] sm:$0xff] %v677
        %806 = vst [vmem:[%s237 + $0x1a8] sm:$0xff] %v678
        %807 = vst [vmem:[%s237 + $0x1b0] sm:$0xff] %v679
        %808 = vst [vmem:[%s237 + $0x1b8] sm:$0xff] %v680
        %809 = vst [vmem:[%s237 + $0x1c0] sm:$0xff] %v681
        %810 = vst [vmem:[%s237 + $0x1c8] sm:$0xff] %v682
        %811 = vst [vmem:[%s237 + $0x1d0] sm:$0xff] %v683
        %812 = vst [vmem:[%s237 + $0x1d8] sm:$0xff] %v684
        %813 = vst [vmem:[%s237 + $0x1e0] sm:$0xff] %v685
        %814 = vst [vmem:[%s237 + $0x1e8] sm:$0xff] %v686
        %815 = vst [vmem:[%s237 + $0x1f0] sm:$0xff] %v687
        %816 = vst [vmem:[%s237 + $0x1f8] sm:$0xff] %v688
        %817 = vst [vmem:[%s237 + $0x200] sm:$0xff] %v689
        %818 = vst [vmem:[%s237 + $0x208] sm:$0xff] %v690
        %819 = vst [vmem:[%s237 + $0x210] sm:$0xff] %v691
        %820 = vst [vmem:[%s237 + $0x218] sm:$0xff] %v692
        %821 = vst [vmem:[%s237 + $0x220] sm:$0xff] %v693
        %822 = vst [vmem:[%s237 + $0x228] sm:$0xff] %v694
        %823 = vst [vmem:[%s237 + $0x230] sm:$0xff] %v695
        %824 = vst [vmem:[%s237 + $0x238] sm:$0xff] %v696
        %825 = vst [vmem:[%s237 + $0x240] sm:$0xff] %v697
        %826 = vst [vmem:[%s237 + $0x248] sm:$0xff] %v698
        %827 = vst [vmem:[%s237 + $0x250] sm:$0xff] %v699
        %828 = vst [vmem:[%s237 + $0x258] sm:$0xff] %v700
        %829 = vst [vmem:[%s237 + $0x260] sm:$0xff] %v701
        %830 = vst [vmem:[%s237 + $0x268] sm:$0xff] %v702
        %831 = vst [vmem:[%s237 + $0x270] sm:$0xff] %v703
        %832 = vst [vmem:[%s237 + $0x278] sm:$0xff] %v704
        %833 = vst [vmem:[%s237 + $0x280] sm:$0xff] %v705
        %834 = vst [vmem:[%s237 + $0x288] sm:$0xff] %v706
        %835 = vst [vmem:[%s237 + $0x290] sm:$0xff] %v707
        %836 = vst [vmem:[%s237 + $0x298] sm:$0xff] %v708
        %837 = vst [vmem:[%s237 + $0x2a0] sm:$0xff] %v709
        %838 = vst [vmem:[%s237 + $0x2a8] sm:$0xff] %v710
        %839 = vst [vmem:[%s237 + $0x2b0] sm:$0xff] %v711
        %840 = vst [vmem:[%s237 + $0x2b8] sm:$0xff] %v712
        %841 = vst [vmem:[%s237 + $0x2c0] sm:$0xff] %v713
        %842 = vst [vmem:[%s237 + $0x2c8] sm:$0xff] %v714
        %843 = vst [vmem:[%s237 + $0x2d0] sm:$0xff] %v715
        %844 = vst [vmem:[%s237 + $0x2d8] sm:$0xff] %v716
        %845 = vst [vmem:[%s237 + $0x2e0] sm:$0xff] %v717
        %846 = vst [vmem:[%s237 + $0x2e8] sm:$0xff] %v718
        %847 = vst [vmem:[%s237 + $0x2f0] sm:$0xff] %v719
        %848 = vst [vmem:[%s237 + $0x2f8] sm:$0xff] %v720
        %849 = vst [vmem:[%s237 + $0x300] sm:$0xff] %v721
        %850 = vst [vmem:[%s237 + $0x308] sm:$0xff] %v722
        %851 = vst [vmem:[%s237 + $0x310] sm:$0xff] %v723
        %852 = vst [vmem:[%s237 + $0x318] sm:$0xff] %v724
        %853 = vst [vmem:[%s237 + $0x320] sm:$0xff] %v725
        %854 = vst [vmem:[%s237 + $0x328] sm:$0xff] %v726
        %855 = vst [vmem:[%s237 + $0x330] sm:$0xff] %v727
        %856 = vst [vmem:[%s237 + $0x338] sm:$0xff] %v728
        %857 = vst [vmem:[%s237 + $0x340] sm:$0xff] %v729
        %858 = vst [vmem:[%s237 + $0x348] sm:$0xff] %v730
        %859 = vst [vmem:[%s237 + $0x350] sm:$0xff] %v731
        %860 = vst [vmem:[%s237 + $0x358] sm:$0xff] %v732
        %861 = vst [vmem:[%s237 + $0x360] sm:$0xff] %v733
        %862 = vst [vmem:[%s237 + $0x368] sm:$0xff] %v734
        %863 = vst [vmem:[%s237 + $0x370] sm:$0xff] %v735
        %864 = vst [vmem:[%s237 + $0x378] sm:$0xff] %v736
        %865 = vst [vmem:[%s237 + $0x380] sm:$0xff] %v737
        %866 = vst [vmem:[%s237 + $0x388] sm:$0xff] %v738
        %867 = vst [vmem:[%s237 + $0x390] sm:$0xff] %v739
        %868 = vst [vmem:[%s237 + $0x398] sm:$0xff] %v740
        %869 = vst [vmem:[%s237 + $0x3a0] sm:$0xff] %v741
        %870 = vst [vmem:[%s237 + $0x3a8] sm:$0xff] %v742
        %871 = vst [vmem:[%s237 + $0x3b0] sm:$0xff] %v743
        %872 = vst [vmem:[%s237 + $0x3b8] sm:$0xff] %v744
        %873 = vst [vmem:[%s237 + $0x3c0] sm:$0xff] %v745
        %874 = vst [vmem:[%s237 + $0x3c8] sm:$0xff] %v746
        %875 = vst [vmem:[%s237 + $0x3d0] sm:$0xff] %v747
        %876 = vst [vmem:[%s237 + $0x3d8] sm:$0xff] %v748
        %877 = vst [vmem:[%s237 + $0x3e0] sm:$0xff] %v749
        %878 = vst [vmem:[%s237 + $0x3e8] sm:$0xff] %v750
        %879 = vst [vmem:[%s237 + $0x3f0] sm:$0xff] %v751
        %880 = vst [vmem:[%s237 + $0x3f8] sm:$0xff] %v752
        %s881 = smul.u32 128, %s21
        %p882 = scmp.lt.s32.totalorder %s881, 383
        %s883 = scalar_select %p882, %s881, 383
        %s884 = smul.addr %s883, 8
        %s885 = scalar_lea.vmem %s3, %s884
        // Predicated region
        $region41: #{_fwd.1} parent=31 // pred_check
          %p886 = pneg %p112
        $region42: #{_fwd.1} parent=31 // pred_check_branch
          %888 = sbr.rel (%p886) target = $region44
        $region43: #{_fwd.1} parent=31 // pred_region
          %s889 = smul.u32 128, %s21
        $region44: #{_fwd.1} parent=31 // pred_fallthru
          _
      $region32: #{_fwd.1} parent=5 // pred_fallthru
        _
      %p890 = scmp.le.s32.totalorder 2, %s16
      // Predicated region
      $region45: #{_fwd.1} parent=5 // pred_check
        %p891 = pneg %p890
      $region46: #{_fwd.1} parent=5 // pred_check_branch
        %893 = sbr.rel (%p891) target = $region48
      $region47: #{_fwd.1} parent=5 // pred_region
        %s894 = ssub.s32 %s16, 2
        // Predicated region
        $region49: #{_fwd.1} parent=47 // pred_check
          %p895 = pneg %p118
        $region50: #{_fwd.1} parent=47 // pred_check_branch
          %897 = sbr.rel (%p895) target = $region52
        $region51: #{_fwd.1} parent=47 // pred_region
          %s898 = smul.u32 128, %s22
          %p899 = scmp.lt.s32.totalorder %s898, 383
          %s900 = scalar_select %p899, %s898, 383
          %s901 = smul.addr %s900, 8
          %s902 = scalar_lea.vmem %s3, %s901
        $region52: #{_fwd.1} parent=47 // pred_fallthru
          _
      $region48: #{_fwd.1} parent=5 // pred_fallthru
        _
    $region6: #{_fwd.1} parent=1 // loop_footer
      %s20 = sadd.s32 1, %s16
    $region7: #{_fwd.1} parent=1 // loop_footer_branch
      %15 = sbr.rel target = $region3
    $region8: #{_fwd.1} parent=1 // loop_exit
      _
    %903 = vsyncpa [#allocation4], 1
    %s904 = scalar_lea.sflag [#allocation4], 1
    %905 = vsyncpa %s904, 1
    %906 = vsyncpa [#allocation6], 1
    %s907 = scalar_lea.sflag [#allocation6], 1
    %908 = vsyncpa %s907, 1

</llo_original>
